<compile_context>
chip_gen: v7x
topology: tpu7x:2x2x1
jax: 0.10.0
libtpu: 0.0.40
codegen_flags: <defaults>
</compile_context>

<pallas_src>
import functools

import jax
import jax.numpy as jnp
from jax.experimental import pallas as pl
from jax.experimental.pallas import tpu as pltpu


def _round_up(n, m):
    return ((n + m - 1) // m) * m


def _ceil_div(a, b):
    return -(-a // b)


def _fused_affine_relu_kernel(x_ref, w_ref, b_ref, o_ref):
    # One MXU push per batch tile: relu(x @ W_eff + b_eff).
    y = jnp.dot(x_ref[...], w_ref[...], preferred_element_type=jnp.float32)
    o_ref[...] = jnp.maximum(y + b_ref[...], 0.0).astype(o_ref.dtype)


def fuse_linear_params(params):
    """Fold fc_1, fc_2, fc_3 into a single affine map (done once, not per call).

    Valid only because the module applies ReLU solely after fc_3."""
    w1, b1, w2, b2, w3, b3 = params
    w_eff = w1 @ w2 @ w3                      # (10, 2)
    b_eff = (b1 @ w2 + b2) @ w3 + b3          # (1, 2)
    return w_eff, b_eff


def _choose_tiling(batch, block_batch):
    """Pick (n_steps, tile_rows).  Prefer an even step count (>= 2) so v7x can
    shard the 'parallel' batch axis evenly across its two TensorCores, but use
    a single step for small batches to avoid pointless padding."""
    n_steps = _ceil_div(batch, block_batch)
    if n_steps > 1 and n_steps % 2 == 1:
        n_steps += 1
    tb = _round_up(_ceil_div(batch, n_steps), 8)   # minimal 8-row-aligned tile
    return n_steps, tb


@functools.partial(jax.jit, static_argnames=("block_batch",))
def linear_model_forward(x, w_eff, b_eff, *, block_batch=4096):
    """relu(x @ w_eff + b_eff).  x: (batch, 10) f32, w_eff: (10, 2), b_eff: (1, 2)."""
    batch, in_dim = x.shape
    out_dim = w_eff.shape[1]

    n_steps, tb = _choose_tiling(batch, block_batch)
    batch_pad = n_steps * tb
    if batch_pad != batch:
        # Under jit this pad fuses into the graph (no standalone eager HBM pass).
        x = jnp.pad(x, ((0, batch_pad - batch), (0, 0)))

    out = pl.pallas_call(
        _fused_affine_relu_kernel,
        out_shape=jax.ShapeDtypeStruct((batch_pad, out_dim), jnp.float32),
        grid=(n_steps,),
        in_specs=[
            # x: tiled over batch; feature dim (10) is the full array dim.
            pl.BlockSpec((tb, in_dim), lambda i: (i, 0)),
            # W_eff / b_eff: full-array blocks, same block index every step
            # -> loaded once, VMEM-resident, no in-kernel sub-tile slicing.
            pl.BlockSpec((in_dim, out_dim), lambda i: (0, 0)),
            pl.BlockSpec((1, out_dim), lambda i: (0, 0)),
        ],
        # Narrow (tb, out_dim) output block: writes only the real 8 B/row of
        # data instead of a 128-lane padded slab; wrapper slices rows only.
        out_specs=pl.BlockSpec((tb, out_dim), lambda i: (i, 0)),
        compiler_params=pltpu.CompilerParams(
            dimension_semantics=("parallel",),
            vmem_limit_bytes=32 * 1024 * 1024,
        ),
    )(x, w_eff, b_eff)

    return out[:batch]


def init_linear(key, in_features, out_features):
    # Deterministic init mimicking PyTorch nn.Linear defaults
    # (uniform in [-1/sqrt(in), 1/sqrt(in)] for both weight and bias),
    # with the weight stored as (in_features, out_features).
    kw, kb = jax.random.split(key)
    bound = 1.0 / jnp.sqrt(jnp.float32(in_features))
    w = jax.random.uniform(kw, (in_features, out_features), jnp.float32, -bound, bound)
    b = jax.random.uniform(kb, (1, out_features), jnp.float32, -bound, bound)
    return w, b


def _reference(x, params):
    w1, b1, w2, b2, w3, b3 = params
    return jnp.maximum(((x @ w1 + b1) @ w2 + b2) @ w3 + b3, 0.0)


if __name__ == "__main__":
    key = jax.random.PRNGKey(0)
    k_x, k_x2, k_x3, k1, k2, k3 = jax.random.split(key, 6)

    w1, b1 = init_linear(k1, 10, 20)
    w2, b2 = init_linear(k2, 20, 30)
    w3, b3 = init_linear(k3, 30, 2)
    params = (w1, b1, w2, b2, w3, b3)

    # Constant fusion hoisted out of the per-call path (done once).
    w_eff, b_eff = fuse_linear_params(params)

    # Small case: single grid step, batch already 8-aligned.
    batch = 8
    x = jax.random.normal(k_x, (batch, 10), jnp.float32)
    out = jax.block_until_ready(linear_model_forward(x, w_eff, b_eff))
    ref = _reference(x, params)
    assert out.shape == (batch, 2)
    assert jnp.allclose(out, ref, atol=1e-4, rtol=1e-4)

    # Non-8-multiple batch: exercises row padding within one step.
    batch2 = 13
    x2 = jax.random.normal(k_x2, (batch2, 10), jnp.float32)
    out2 = jax.block_until_ready(linear_model_forward(x2, w_eff, b_eff))
    ref2 = _reference(x2, params)
    assert out2.shape == (batch2, 2)
    assert jnp.allclose(out2, ref2, atol=1e-4, rtol=1e-4)

    # Larger batch with a small block_batch: exercises multi-step (even) grid,
    # adaptive tile sizing, and padding + row slicing.
    batch3 = 1040
    x3 = jax.random.normal(k_x3, (batch3, 10), jnp.float32)
    out3 = jax.block_until_ready(
        linear_model_forward(x3, w_eff, b_eff, block_batch=256))
    ref3 = _reference(x3, params)
    assert out3.shape == (batch3, 2)
    assert jnp.allclose(out3, ref3, atol=1e-4, rtol=1e-4)

    print("KERNEL_OK")
</pallas_src>

<mosaic_0001>
module attributes {stable_mosaic.version = 11 : i64} {
  func.func @_fused_affine_relu_kernel(%arg0: i32, %arg1: memref<8x10xf32, #tpu.memory_space<vmem>>, %arg2: memref<10x2xf32, #tpu.memory_space<vmem>>, %arg3: memref<1x2xf32, #tpu.memory_space<vmem>>, %arg4: memref<8x2xf32, #tpu.memory_space<vmem>>) attributes {dimension_semantics = [#tpu.dimension_semantics<parallel>], iteration_bounds = array<i64: 1>, scalar_prefetch = 0 : i64, scratch_operands = 0 : i64, tpu.core_type = #tpu.core_type<tc>, window_params = [{transform_indices = @transform_0, window_bounds = array<i64: 8, 10>}, {pipeline_mode = #tpu.pipeline_mode<synchronous>, transform_indices = @transform_1, window_bounds = array<i64: 10, 2>}, {pipeline_mode = #tpu.pipeline_mode<synchronous>, transform_indices = @transform_2, window_bounds = array<i64: 1, 2>}, {transform_indices = @transform_3, window_bounds = array<i64: 8, 2>}]} {
    %c0 = arith.constant 0 : index
    %c0_0 = arith.constant 0 : index
    %0 = vector.load %arg1[%c0, %c0_0] : memref<8x10xf32, #tpu.memory_space<vmem>>, vector<8x10xf32>
    %c0_1 = arith.constant 0 : index
    %c0_2 = arith.constant 0 : index
    %1 = vector.load %arg2[%c0_1, %c0_2] : memref<10x2xf32, #tpu.memory_space<vmem>>, vector<10x2xf32>
    %cst = arith.constant dense<0.000000e+00> : vector<8x2xf32>
    %2 = tpu.matmul %0, %1, %cst {dimension_numbers = #tpu.dot_dimension_numbers<[1], [0], [0], [1], [0, 0, 1, 1], [], []>} : vector<8x10xf32>, vector<10x2xf32>, vector<8x2xf32> -> vector<8x2xf32>
    %c0_3 = arith.constant 0 : index
    %c0_4 = arith.constant 0 : index
    %3 = vector.load %arg3[%c0_3, %c0_4] : memref<1x2xf32, #tpu.memory_space<vmem>>, vector<1x2xf32>
    %4 = vector.broadcast %3 : vector<1x2xf32> to vector<8x2xf32>
    %5 = arith.addf %2, %4 : vector<8x2xf32>
    %cst_5 = arith.constant 0.000000e+00 : f32
    %6 = vector.broadcast %cst_5 : f32 to vector<8x2xf32>
    %7 = arith.maximumf %5, %6 : vector<8x2xf32>
    %c0_6 = arith.constant 0 : index
    %c0_7 = arith.constant 0 : index
    %8 = vector.load %arg4[%c0_6, %c0_7] : memref<8x2xf32, #tpu.memory_space<vmem>>, vector<8x2xf32>
    tpu.vector_store %arg4[%c0_6, %c0_7], %7 {strides = array<i32>} : memref<8x2xf32, #tpu.memory_space<vmem>>, vector<8x2xf32>,
    return
  }
  func.func @transform_0(%arg0: i32) -> (i32, i32) {
    %c0_i32 = arith.constant 0 : i32
    %c0_i32_0 = arith.constant 0 : i32
    return %arg0, %c0_i32 : i32, i32
  }
  func.func @transform_1(%arg0: i32) -> (i32, i32) {
    %c0_i32 = arith.constant 0 : i32
    %c0_i32_0 = arith.constant 0 : i32
    %c0_i32_1 = arith.constant 0 : i32
    return %c0_i32, %c0_i32_0 : i32, i32
  }
  func.func @transform_2(%arg0: i32) -> (i32, i32) {
    %c0_i32 = arith.constant 0 : i32
    %c0_i32_0 = arith.constant 0 : i32
    %c0_i32_1 = arith.constant 0 : i32
    return %c0_i32, %c0_i32_0 : i32, i32
  }
  func.func @transform_3(%arg0: i32) -> (i32, i32) {
    %c0_i32 = arith.constant 0 : i32
    %c0_i32_0 = arith.constant 0 : i32
    return %arg0, %c0_i32 : i32, i32
  }
}

</mosaic_0001>

<llo_original>
// kernel: linear_model_forward.1
$region0: #{linear_model_forward.1}
  #allocation0 [shape = 'u32[]', space=smem, size = 0x4, offset = 0x4, fixed_abs, tag = 'smem constant byte address 0x4 - core index']
  #allocation1 [shape = 'u32[144,128]{1,0:T(1,128)}', space=vmem, size = 0x12000, scoped, tag = 'internal scratch']
  %s0 = inlined_call_operand.vmem [shape: f32[8,10], index: 0, kind: input, shape index: {}]
  %s1 = inlined_call_operand.vmem [shape: f32[10,2], index: 1, kind: input, shape index: {}]
  %s2 = inlined_call_operand.vmem [shape: f32[1,2], index: 2, kind: input, shape index: {}]
  %s3 = inlined_call_operand.vmem [shape: f32[8,2], index: 3, kind: output, shape index: {}]
  %s4 = sld [smem:[#allocation0]]
  $region22: #{linear_model_forward.1} parent=0
    _
  %s6 = ssub.s32 1, %s4
  %s7 = scalar_select 0, %s6, %s4
  // Predicated region
  $region2: #{linear_model_forward.1} parent=0 // pred_check
    _
  $region3: #{linear_model_forward.1} parent=0 // pred_check_branch
    %9 = sbr.rel (0) target = $region5
  $region4: #{linear_model_forward.1} parent=0 // pred_region
    _
  $region5: #{linear_model_forward.1} parent=0 // pred_fallthru
    _
  // Predicated region
  $region6: #{linear_model_forward.1} parent=0 // pred_check
    _
  $region7: #{linear_model_forward.1} parent=0 // pred_check_branch
    %11 = sbr.rel (0) target = $region9
  $region8: #{linear_model_forward.1} parent=0 // pred_region
    _
  $region9: #{linear_model_forward.1} parent=0 // pred_fallthru
    _
  // Predicated region
  $region10: #{linear_model_forward.1} parent=0 // pred_check
    _
  $region11: #{linear_model_forward.1} parent=0 // pred_check_branch
    %13 = sbr.rel (0) target = $region13
  $region12: #{linear_model_forward.1} parent=0 // pred_region
    _
  $region13: #{linear_model_forward.1} parent=0 // pred_fallthru
    _
  %v14 = vld [vmem:[%s0] sm:$0xff]
  %v15 = vld [vmem:[%s1] sm:$0xff]
  %v16 = vld [vmem:[%s1 + $0x8] sm:$0x3]
  %v17 = vld [vmem:[%s2] sm:$0x1]
  %v19 = vlaneseq
  %v20 = vshrl.u32 %v19, 7
  %v21 = vsub.s32 0, %v20
  %v22 = vrot.slane %v17, %v21
  %vm24 = vcmask 80896
  %v26 = vsel %vm24, %v14, 0
  %vm28 = vcmask 1041408
  %v30 = vsel %vm28, %v16, 0
  %32 = vmatprep.subr.mxu0 0.0
  %33 = vmatpush1.msra.mxu0 %v15
  %34 = vmatprep.subr.mxu0 0.0
  %35 = vmatpush1.msra.mxu0 %v30
  %36 = vmatprep.subr.mxu0 0.0
  %37 = vmatpush1.msra.mxu0 0.0
  %38 = vmatprep.subr.mxu0 0.0
  %39 = vmatpush1.msra.mxu0 0.0
  %40 = vmatprep.subr.mxu0 0.0
  %41 = vmatpush1.msra.mxu0 0.0
  %42 = vmatprep.subr.mxu0 0.0
  %43 = vmatpush1.msra.mxu0 0.0
  %44 = vmatprep.subr.mxu0 0.0
  %45 = vmatpush1.msra.mxu0 0.0
  %46 = vmatprep.subr.mxu0 0.0
  %47 = vmatpush1.msra.mxu0 0.0
  %48 = vmatprep.subr.mxu0 0.0
  %49 = vmatpush1.msra.mxu0 0.0
  %50 = vmatprep.subr.mxu0 0.0
  %51 = vmatpush1.msra.mxu0 0.0
  %52 = vmatprep.subr.mxu0 0.0
  %53 = vmatpush1.msra.mxu0 0.0
  %54 = vmatprep.subr.mxu0 0.0
  %55 = vmatpush1.msra.mxu0 0.0
  %56 = vmatprep.subr.mxu0 0.0
  %57 = vmatpush1.msra.mxu0 0.0
  %58 = vmatprep.subr.mxu0 0.0
  %59 = vmatpush1.msra.mxu0 0.0
  %60 = vmatprep.subr.mxu0 0.0
  %61 = vmatpush1.msra.mxu0 0.0
  %62 = vmatprep.subr.mxu0 0.0
  %63 = vmatpush1.msra.mxu0 0.0
  %64 = vmatprep.subr.mxu0 0.0
  %65 = vmatpush1.msra.mxu0 0.0
  %66 = vmatprep.subr.mxu0 0.0
  %67 = vmatpush1.msra.mxu0 0.0
  %68 = vmatprep.subr.mxu0 0.0
  %69 = vmatpush1.msra.mxu0 0.0
  %70 = vmatprep.subr.mxu0 0.0
  %71 = vmatpush1.msra.mxu0 0.0
  %72 = vmatprep.subr.mxu0 0.0
  %73 = vmatpush1.msra.mxu0 0.0
  %74 = vmatprep.subr.mxu0 0.0
  %75 = vmatpush1.msra.mxu0 0.0
  %76 = vmatprep.subr.mxu0 0.0
  %77 = vmatpush1.msra.mxu0 0.0
  %78 = vmatprep.subr.mxu0 0.0
  %79 = vmatpush1.msra.mxu0 0.0
  %80 = vmatprep.subr.mxu0 0.0
  %81 = vmatpush1.msra.mxu0 0.0
  %82 = vmatprep.subr.mxu0 0.0
  %83 = vmatpush1.msra.mxu0 0.0
  %84 = vmatprep.subr.mxu0 0.0
  %85 = vmatpush1.msra.mxu0 0.0
  %86 = vmatprep.subr.mxu0 0.0
  %87 = vmatpush1.msra.mxu0 0.0
  %88 = vmatprep.subr.mxu0 0.0
  %89 = vmatpush1.msra.mxu0 0.0
  %90 = vmatprep.subr.mxu0 0.0
  %91 = vmatpush1.msra.mxu0 0.0
  %92 = vmatprep.subr.mxu0 0.0
  %93 = vmatpush1.msra.mxu0 0.0
  %94 = vmatprep.subr.mxu0 0.0
  %95 = vmatpush1.msra.mxu0 0.0
  %96 = vmatprep.mubr.f32.mxu0 0.0
  %97 = vmatmul.mubr.f32.gmra.mrb[0].mxu0 %v26
  %v98 = vpop.f32.mrb[0].mxu0
  %v99 = vadd.f32 %v22, %v98
  %v100 = vpop.f32.mrb[0].mxu0
  %101 = vdwg.mxu0
  %v102 = vmax.f32 %v99, 0.0
  %vm103 = vcmask 15360
  %104 = vst.msk [vmem:[%s3] sm:$0xff] %vm103, %v102
  // Predicated region
  $region14: #{linear_model_forward.1} parent=0 // pred_check
    _
  $region15: #{linear_model_forward.1} parent=0 // pred_check_branch
    %106 = sbr.rel (0) target = $region17
  $region16: #{linear_model_forward.1} parent=0 // pred_region
    _
  $region17: #{linear_model_forward.1} parent=0 // pred_fallthru
    _
  // Predicated region
  $region18: #{linear_model_forward.1} parent=0 // pred_check
    _
  $region19: #{linear_model_forward.1} parent=0 // pred_check_branch
    %108 = sbr.rel (0) target = $region21
  $region20: #{linear_model_forward.1} parent=0 // pred_region
    _
  $region21: #{linear_model_forward.1} parent=0 // pred_fallthru
    _

</llo_original>
